<compile_context>
chip_gen: v7x
topology: tpu7x:2x2x1
jax: 0.10.0
libtpu: 0.0.40
codegen_flags: <defaults>
</compile_context>

<pallas_src>
import math
from functools import partial

import jax
import jax.numpy as jnp
from jax.experimental import pallas as pl
from jax.experimental.pallas import tpu as pltpu

NEG = -float(jnp.finfo(jnp.float32).max)   # torch masked_fill value (-fmax)


# =========================== Pallas kernel ===================================

def _make_flash_kernel(causal: bool, has_mask: bool, tq: int, tk: int):
    """One (q-tile, kv-tile) step of flash attention with online softmax."""

    def kernel(*refs):
        if has_mask:
            q_ref, k_ref, v_ref, m_ref, o_ref, m_sc, l_sc, acc_sc = refs
        else:
            q_ref, k_ref, v_ref, o_ref, m_sc, l_sc, acc_sc = refs

        qi = pl.program_id(2)
        ki = pl.program_id(3)

        @pl.when(ki == 0)
        def _init():
            m_sc[...] = jnp.full_like(m_sc, NEG)
            l_sc[...] = jnp.zeros_like(l_sc)
            acc_sc[...] = jnp.zeros_like(acc_sc)

        def compute():
            d = q_ref.shape[-1]
            scale = d ** -0.5
            q = q_ref[...] * scale                               # (tq, d)

            # QK^T on the MXU, f32 accumulation, no explicit transpose.
            s = jax.lax.dot_general(
                q, k_ref[...], (((1,), (1,)), ((), ())),
                preferred_element_type=jnp.float32)              # (tq, tk)

            if has_mask:
                keep = m_ref[...] > 0.0                          # (1, tk)
                s = jnp.where(keep, s, NEG)

            if causal:
                row = qi * tq + jax.lax.broadcasted_iota(jnp.int32, (tq, tk), 0)
                col = ki * tk + jax.lax.broadcasted_iota(jnp.int32, (tq, tk), 1)
                s = jnp.where(col > row, NEG, s)                 # triu(1)

            m_prev = m_sc[...]                                   # (tq, 1)
            m_new = jnp.maximum(m_prev, jnp.max(s, axis=-1, keepdims=True))
            alpha = jnp.exp(m_prev - m_new)                      # rescale
            p = jnp.exp(s - m_new)                               # (tq, tk)
            l_sc[...] = alpha * l_sc[...] + jnp.sum(p, axis=-1, keepdims=True)
            acc_sc[...] = alpha * acc_sc[...] + jnp.dot(
                p.astype(v_ref.dtype), v_ref[...],
                preferred_element_type=jnp.float32)
            m_sc[...] = m_new

        if causal:
            # Skip kv tiles that are entirely above the diagonal for this q tile.
            pl.when(ki * tk < (qi + 1) * tq)(compute)
        else:
            compute()

        @pl.when(ki == pl.num_programs(3) - 1)
        def _finalize():
            inv = pl.reciprocal(l_sc[...], approx=True)          # EUP divide
            o_ref[...] = (acc_sc[...] * inv).astype(o_ref.dtype)

    return kernel


# =========================== wrapper (Attend.forward) ========================

def _pick_tile(n: int, target: int) -> int:
    for t in (target, 256, 128, 64, 32, 16, 8):
        if t <= n and n % t == 0:
            return t
    return n


@partial(jax.jit, static_argnames=('causal',))
def attend(q, k, v, mask=None, self_mask=None, *, causal=False):
    """Eval-mode Attend.forward.
    q: (b, h, i, d); k/v: (b, h, j, d) or shared across heads (b, j, d);
    mask / self_mask: optional (b, j) bool key masks."""
    b, h, i, d = q.shape
    kv_rank = k.ndim
    j = k.shape[-2]

    tq = _pick_tile(i, 256)
    tk = _pick_tile(j, 256)

    # combine key mask and self mask once (both are masked_fill on keys)
    keep = None
    if mask is not None:
        keep = mask
    if self_mask is not None:
        keep = self_mask if keep is None else (keep & self_mask)
    has_mask = keep is not None
    if has_mask and (tk % 128 != 0) and (tk != j):
        tk = j   # keep the mask block lane-layout legal for odd sequence lengths

    grid = (b, h, i // tq, j // tk)

    q_spec = pl.BlockSpec((None, None, tq, d), lambda bi, hi, qi, ki: (bi, hi, qi, 0))
    o_spec = pl.BlockSpec((None, None, tq, d), lambda bi, hi, qi, ki: (bi, hi, qi, 0))
    if kv_rank == 4:
        kv_spec = pl.BlockSpec((None, None, tk, d), lambda bi, hi, qi, ki: (bi, hi, ki, 0))
    else:
        # shared-kv path: head index ignored -> no per-head broadcast in HBM
        kv_spec = pl.BlockSpec((None, tk, d), lambda bi, hi, qi, ki: (bi, ki, 0))

    in_specs = [q_spec, kv_spec, kv_spec]
    args = [q, k, v]
    if has_mask:
        mk = keep.reshape(b, 1, j).astype(jnp.float32)           # (b, 1, j)
        args.append(mk)
        in_specs.append(
            pl.BlockSpec((None, 1, tk), lambda bi, hi, qi, ki: (bi, 0, ki)))

    out = pl.pallas_call(
        _make_flash_kernel(causal, has_mask, tq, tk),
        grid_spec=pltpu.PrefetchScalarGridSpec(
            num_scalar_prefetch=0,
            grid=grid,
            in_specs=in_specs,
            out_specs=o_spec,
            scratch_shapes=[
                pltpu.VMEM((tq, 1), jnp.float32),   # running max
                pltpu.VMEM((tq, 1), jnp.float32),   # running sum
                pltpu.VMEM((tq, d), jnp.float32),   # output accumulator
            ]),
        out_shape=jax.ShapeDtypeStruct((b, h, i, d), q.dtype),
        compiler_params=pltpu.CompilerParams(
            dimension_semantics=("parallel", "parallel", "parallel", "arbitrary"),
            vmem_limit_bytes=32 * 1024 * 1024),
    )(*args)

    # TODO(synk): attn_dropout (nn.Dropout) is training-only; identity here.
    return out


# =========================== pure-JAX reference ==============================

def attend_ref(q, k, v, mask=None, self_mask=None, causal=False):
    scale = q.shape[-1] ** -0.5
    kv_eq = 'bjd' if k.ndim == 3 else 'bhjd'
    sim = jnp.einsum(f'bhid,{kv_eq}->bhij', q, k) * scale
    if mask is not None:
        sim = jnp.where(mask[:, None, None, :], sim, NEG)
    if causal:
        i, j = sim.shape[-2:]
        cm = jnp.triu(jnp.ones((i, j), bool), 1)
        sim = jnp.where(cm, NEG, sim)
    if self_mask is not None:
        sim = jnp.where(self_mask[:, None, None, :], sim, NEG)
    attn = jax.nn.softmax(sim, axis=-1)
    return jnp.einsum(f'bhij,{kv_eq}->bhid', attn, v)


# =========================== demo ============================================

if __name__ == "__main__":
    key = jax.random.PRNGKey(0)
    kq, kk, kv, kk3, kv3 = jax.random.split(key, 5)

    B, H, N, J, D = 2, 4, 16, 16, 64
    q = jax.random.normal(kq, (B, H, N, D), jnp.float32)
    k = jax.random.normal(kk, (B, H, J, D), jnp.float32)
    v = jax.random.normal(kv, (B, H, J, D), jnp.float32)
    mask = jnp.arange(J)[None, :] < jnp.array([J, 11])[:, None]       # (B, J)
    self_mask = jnp.arange(J)[None, :] < jnp.array([13, J])[:, None]  # (B, J)

    # full path: per-head k/v, key mask, self mask, causal
    out = jax.block_until_ready(
        attend(q, k, v, mask=mask, self_mask=self_mask, causal=True))
    ref = attend_ref(q, k, v, mask=mask, self_mask=self_mask, causal=True)
    assert out.shape == (B, H, N, D), out.shape
    assert bool(jnp.all(jnp.isfinite(out)))
    assert float(jnp.max(jnp.abs(out - ref))) < 5e-2

    # shared-kv path: rank-3 k/v, no masks, non-causal
    k3 = jax.random.normal(kk3, (B, J, D), jnp.float32)
    v3 = jax.random.normal(kv3, (B, J, D), jnp.float32)
    out2 = jax.block_until_ready(attend(q, k3, v3))
    ref2 = attend_ref(q, k3, v3)
    assert out2.shape == (B, H, N, D), out2.shape
    assert bool(jnp.all(jnp.isfinite(out2)))
    assert float(jnp.max(jnp.abs(out2 - ref2))) < 5e-2

    print("KERNEL_OK")
</pallas_src>

<mosaic_0001>
module attributes {stable_mosaic.version = 11 : i64} {
  func.func @kernel(%arg0: i32, %arg1: i32, %arg2: i32, %arg3: i32, %arg4: memref<1x1x16x64xf32, #tpu.memory_space<vmem>>, %arg5: memref<1x1x16x64xf32, #tpu.memory_space<vmem>>, %arg6: memref<1x1x16x64xf32, #tpu.memory_space<vmem>>, %arg7: memref<1x1x16xf32, #tpu.memory_space<vmem>>, %arg8: memref<1x1x16x64xf32, #tpu.memory_space<vmem>>, %arg9: memref<16x1xf32, #tpu.memory_space<vmem>>, %arg10: memref<16x1xf32, #tpu.memory_space<vmem>>, %arg11: memref<16x64xf32, #tpu.memory_space<vmem>>) attributes {dimension_semantics = [#tpu.dimension_semantics<parallel>, #tpu.dimension_semantics<parallel>, #tpu.dimension_semantics<parallel>, #tpu.dimension_semantics<arbitrary>], iteration_bounds = array<i64: 2, 4, 1, 1>, scalar_prefetch = 0 : i64, scratch_operands = 3 : i64, tpu.core_type = #tpu.core_type<tc>, window_params = [{transform_indices = @transform_0, window_bounds = array<i64: 1, 1, 16, 64>}, {transform_indices = @transform_1, window_bounds = array<i64: 1, 1, 16, 64>}, {transform_indices = @transform_2, window_bounds = array<i64: 1, 1, 16, 64>}, {transform_indices = @transform_3, window_bounds = array<i64: 1, 1, 16>}, {transform_indices = @transform_4, window_bounds = array<i64: 1, 1, 16, 64>}]} {
    %c0_i32 = arith.constant 0 : i32
    %0 = arith.cmpi eq, %arg3, %c0_i32 : i32
    %1 = arith.extui %0 : i1 to i32
    %c0_i32_0 = arith.constant 0 : i32
    %2 = arith.cmpi ne, %1, %c0_i32_0 : i32
    scf.if %2 {
      %cst = arith.constant -3.40282347E+38 : f32
      %12 = vector.broadcast %cst : f32 to vector<16x1xf32>
      %c0 = arith.constant 0 : index
      %c0_5 = arith.constant 0 : index
      %13 = vector.load %arg9[%c0, %c0_5] : memref<16x1xf32, #tpu.memory_space<vmem>>, vector<16x1xf32>
      tpu.vector_store %arg9[%c0, %c0_5], %12 {strides = array<i32>} : memref<16x1xf32, #tpu.memory_space<vmem>>, vector<16x1xf32>,
      %cst_6 = arith.constant 0.000000e+00 : f32
      %14 = vector.broadcast %cst_6 : f32 to vector<16x1xf32>
      %c0_7 = arith.constant 0 : index
      %c0_8 = arith.constant 0 : index
      %15 = vector.load %arg10[%c0_7, %c0_8] : memref<16x1xf32, #tpu.memory_space<vmem>>, vector<16x1xf32>
      tpu.vector_store %arg10[%c0_7, %c0_8], %14 {strides = array<i32>} : memref<16x1xf32, #tpu.memory_space<vmem>>, vector<16x1xf32>,
      %cst_9 = arith.constant 0.000000e+00 : f32
      %16 = vector.broadcast %cst_9 : f32 to vector<16x64xf32>
      %c0_10 = arith.constant 0 : index
      %c0_11 = arith.constant 0 : index
      %17 = vector.load %arg11[%c0_10, %c0_11] : memref<16x64xf32, #tpu.memory_space<vmem>>, vector<16x64xf32>
      tpu.vector_store %arg11[%c0_10, %c0_11], %16 {strides = array<i32>} : memref<16x64xf32, #tpu.memory_space<vmem>>, vector<16x64xf32>,
    } else {
    }
    %c16_i32 = arith.constant 16 : i32
    %3 = arith.muli %arg3, %c16_i32 : i32
    %c1_i32 = arith.constant 1 : i32
    %4 = arith.addi %arg2, %c1_i32 : i32
    %c16_i32_1 = arith.constant 16 : i32
    %5 = arith.muli %4, %c16_i32_1 : i32
    %6 = arith.cmpi slt, %3, %5 : i32
    %7 = arith.extui %6 : i1 to i32
    %c0_i32_2 = arith.constant 0 : i32
    %8 = arith.cmpi ne, %7, %c0_i32_2 : i32
    scf.if %8 {
      %c0 = arith.constant 0 : index
      %c0_5 = arith.constant 0 : index
      %c0_6 = arith.constant 0 : index
      %c0_7 = arith.constant 0 : index
      %12 = vector.load %arg4[%c0, %c0_5, %c0_6, %c0_7] : memref<1x1x16x64xf32, #tpu.memory_space<vmem>>, vector<1x1x16x64xf32>
      %13 = vector.shape_cast %12 : vector<1x1x16x64xf32> to vector<16x64xf32>
      %cst = arith.constant 1.250000e-01 : f32
      %14 = vector.broadcast %cst : f32 to vector<16x64xf32>
      %15 = arith.mulf %13, %14 : vector<16x64xf32>
      %c0_8 = arith.constant 0 : index
      %c0_9 = arith.constant 0 : index
      %c0_10 = arith.constant 0 : index
      %c0_11 = arith.constant 0 : index
      %16 = vector.load %arg5[%c0_8, %c0_9, %c0_10, %c0_11] : memref<1x1x16x64xf32, #tpu.memory_space<vmem>>, vector<1x1x16x64xf32>
      %17 = vector.shape_cast %16 : vector<1x1x16x64xf32> to vector<16x64xf32>
      %cst_12 = arith.constant dense<0.000000e+00> : vector<16x16xf32>
      %18 = tpu.matmul %15, %17, %cst_12 {dimension_numbers = #tpu.dot_dimension_numbers<[1], [1], [0], [0], [0, 0, 1, 0], [], []>} : vector<16x64xf32>, vector<16x64xf32>, vector<16x16xf32> -> vector<16x16xf32>
      %c0_13 = arith.constant 0 : index
      %c0_14 = arith.constant 0 : index
      %c0_15 = arith.constant 0 : index
      %19 = vector.load %arg7[%c0_13, %c0_14, %c0_15] : memref<1x1x16xf32, #tpu.memory_space<vmem>>, vector<1x1x16xf32>
      %20 = vector.shape_cast %19 : vector<1x1x16xf32> to vector<1x16xf32>
      %cst_16 = arith.constant 0.000000e+00 : f32
      %21 = vector.broadcast %cst_16 : f32 to vector<1x16xf32>
      %22 = arith.cmpf ogt, %20, %21 : vector<1x16xf32>
      %cst_17 = arith.constant -3.40282347E+38 : f32
      %23 = vector.shape_cast %22 : vector<1x16xi1> to vector<1x16xi1>
      %24 = vector.broadcast %23 : vector<1x16xi1> to vector<16x16xi1>
      %25 = vector.broadcast %cst_17 : f32 to vector<16x16xf32>
      %26 = arith.select %24, %18, %25 : vector<16x16xi1>, vector<16x16xf32>
      %c16_i32_18 = arith.constant 16 : i32
      %27 = arith.muli %arg2, %c16_i32_18 : i32
      %28 = tpu.iota {dimensions = array<i32: 0>} : vector<16x16xi32>
      %29 = vector.broadcast %27 : i32 to vector<16x16xi32>
      %30 = arith.addi %29, %28 : vector<16x16xi32>
      %c16_i32_19 = arith.constant 16 : i32
      %31 = arith.muli %arg3, %c16_i32_19 : i32
      %32 = tpu.iota {dimensions = array<i32: 1>} : vector<16x16xi32>
      %33 = vector.broadcast %31 : i32 to vector<16x16xi32>
      %34 = arith.addi %33, %32 : vector<16x16xi32>
      %35 = arith.cmpi sgt, %34, %30 : vector<16x16xi32>
      %cst_20 = arith.constant -3.40282347E+38 : f32
      %36 = vector.broadcast %cst_20 : f32 to vector<16x16xf32>
      %37 = arith.select %35, %36, %26 : vector<16x16xi1>, vector<16x16xf32>
      %c0_21 = arith.constant 0 : index
      %c0_22 = arith.constant 0 : index
      %38 = vector.load %arg9[%c0_21, %c0_22] : memref<16x1xf32, #tpu.memory_space<vmem>>, vector<16x1xf32>
      %cst_23 = arith.constant dense<0xFF800000> : vector<16xf32>
      %39 = vector.multi_reduction <maximumf>, %37, %cst_23 [1] : vector<16x16xf32> to vector<16xf32>
      %40 = vector.shape_cast %39 : vector<16xf32> to vector<16x1xf32>
      %41 = arith.maximumf %38, %40 : vector<16x1xf32>
      %42 = arith.subf %38, %41 : vector<16x1xf32>
      %43 = math.exp %42 : vector<16x1xf32>
      %44 = vector.broadcast %41 : vector<16x1xf32> to vector<16x16xf32>
      %45 = arith.subf %37, %44 : vector<16x16xf32>
      %46 = math.exp %45 : vector<16x16xf32>
      %c0_24 = arith.constant 0 : index
      %c0_25 = arith.constant 0 : index
      %47 = vector.load %arg10[%c0_24, %c0_25] : memref<16x1xf32, #tpu.memory_space<vmem>>, vector<16x1xf32>
      %48 = arith.mulf %43, %47 : vector<16x1xf32>
      %cst_26 = arith.constant dense<0.000000e+00> : vector<16xf32>
      %49 = vector.multi_reduction <add>, %46, %cst_26 [1] : vector<16x16xf32> to vector<16xf32>
      %50 = vector.shape_cast %49 : vector<16xf32> to vector<16x1xf32>
      %51 = arith.addf %48, %50 : vector<16x1xf32>
      %c0_27 = arith.constant 0 : index
      %c0_28 = arith.constant 0 : index
      %52 = vector.load %arg10[%c0_27, %c0_28] : memref<16x1xf32, #tpu.memory_space<vmem>>, vector<16x1xf32>
      tpu.vector_store %arg10[%c0_27, %c0_28], %51 {strides = array<i32>} : memref<16x1xf32, #tpu.memory_space<vmem>>, vector<16x1xf32>,
      %c0_29 = arith.constant 0 : index
      %c0_30 = arith.constant 0 : index
      %53 = vector.load %arg11[%c0_29, %c0_30] : memref<16x64xf32, #tpu.memory_space<vmem>>, vector<16x64xf32>
      %54 = vector.broadcast %43 : vector<16x1xf32> to vector<16x64xf32>
      %55 = arith.mulf %54, %53 : vector<16x64xf32>
      %c0_31 = arith.constant 0 : index
      %c0_32 = arith.constant 0 : index
      %c0_33 = arith.constant 0 : index
      %c0_34 = arith.constant 0 : index
      %56 = vector.load %arg6[%c0_31, %c0_32, %c0_33, %c0_34] : memref<1x1x16x64xf32, #tpu.memory_space<vmem>>, vector<1x1x16x64xf32>
      %57 = vector.shape_cast %56 : vector<1x1x16x64xf32> to vector<16x64xf32>
      %cst_35 = arith.constant dense<0.000000e+00> : vector<16x64xf32>
      %58 = tpu.matmul %46, %57, %cst_35 {dimension_numbers = #tpu.dot_dimension_numbers<[1], [0], [0], [1], [0, 0, 1, 1], [], []>} : vector<16x16xf32>, vector<16x64xf32>, vector<16x64xf32> -> vector<16x64xf32>
      %59 = arith.addf %55, %58 : vector<16x64xf32>
      %c0_36 = arith.constant 0 : index
      %c0_37 = arith.constant 0 : index
      %60 = vector.load %arg11[%c0_36, %c0_37] : memref<16x64xf32, #tpu.memory_space<vmem>>, vector<16x64xf32>
      tpu.vector_store %arg11[%c0_36, %c0_37], %59 {strides = array<i32>} : memref<16x64xf32, #tpu.memory_space<vmem>>, vector<16x64xf32>,
      %c0_38 = arith.constant 0 : index
      %c0_39 = arith.constant 0 : index
      %61 = vector.load %arg9[%c0_38, %c0_39] : memref<16x1xf32, #tpu.memory_space<vmem>>, vector<16x1xf32>
      tpu.vector_store %arg9[%c0_38, %c0_39], %41 {strides = array<i32>} : memref<16x1xf32, #tpu.memory_space<vmem>>, vector<16x1xf32>,
    } else {
    }
    %c0_i32_3 = arith.constant 0 : i32
    %9 = arith.cmpi eq, %arg3, %c0_i32_3 : i32
    %10 = arith.extui %9 : i1 to i32
    %c0_i32_4 = arith.constant 0 : i32
    %11 = arith.cmpi ne, %10, %c0_i32_4 : i32
    scf.if %11 {
      %c0 = arith.constant 0 : index
      %c0_5 = arith.constant 0 : index
      %12 = vector.load %arg10[%c0, %c0_5] : memref<16x1xf32, #tpu.memory_space<vmem>>, vector<16x1xf32>
      %13 = tpu.reciprocal %12 {approx = true} : vector<16x1xf32> -> vector<16x1xf32>
      %c0_6 = arith.constant 0 : index
      %c0_7 = arith.constant 0 : index
      %14 = vector.load %arg11[%c0_6, %c0_7] : memref<16x64xf32, #tpu.memory_space<vmem>>, vector<16x64xf32>
      %15 = vector.broadcast %13 : vector<16x1xf32> to vector<16x64xf32>
      %16 = arith.mulf %14, %15 : vector<16x64xf32>
      %c0_8 = arith.constant 0 : index
      %c0_9 = arith.constant 0 : index
      %c0_10 = arith.constant 0 : index
      %c0_11 = arith.constant 0 : index
      %17 = vector.load %arg8[%c0_8, %c0_9, %c0_10, %c0_11] : memref<1x1x16x64xf32, #tpu.memory_space<vmem>>, vector<1x1x16x64xf32>
      %18 = vector.shape_cast %17 : vector<1x1x16x64xf32> to vector<16x64xf32>
      %19 = vector.shape_cast %16 : vector<16x64xf32> to vector<1x1x16x64xf32>
      tpu.vector_store %arg8[%c0_8, %c0_9, %c0_10, %c0_11], %19 {strides = array<i32>} : memref<1x1x16x64xf32, #tpu.memory_space<vmem>>, vector<1x1x16x64xf32>,
    } else {
    }
    return
  }
  func.func @transform_0(%arg0: i32, %arg1: i32, %arg2: i32, %arg3: i32) -> (i32, i32, i32, i32) {
    %c0_i32 = arith.constant 0 : i32
    %c0_i32_0 = arith.constant 0 : i32
    return %arg0, %arg1, %arg2, %c0_i32 : i32, i32, i32, i32
  }
  func.func @transform_1(%arg0: i32, %arg1: i32, %arg2: i32, %arg3: i32) -> (i32, i32, i32, i32) {
    %c0_i32 = arith.constant 0 : i32
    %c0_i32_0 = arith.constant 0 : i32
    return %arg0, %arg1, %arg3, %c0_i32 : i32, i32, i32, i32
  }
  func.func @transform_2(%arg0: i32, %arg1: i32, %arg2: i32, %arg3: i32) -> (i32, i32, i32, i32) {
    %c0_i32 = arith.constant 0 : i32
    %c0_i32_0 = arith.constant 0 : i32
    return %arg0, %arg1, %arg3, %c0_i32 : i32, i32, i32, i32
  }
  func.func @transform_3(%arg0: i32, %arg1: i32, %arg2: i32, %arg3: i32) -> (i32, i32, i32) {
    %c0_i32 = arith.constant 0 : i32
    %c0_i32_0 = arith.constant 0 : i32
    return %arg0, %c0_i32, %arg3 : i32, i32, i32
  }
  func.func @transform_4(%arg0: i32, %arg1: i32, %arg2: i32, %arg3: i32) -> (i32, i32, i32, i32) {
    %c0_i32 = arith.constant 0 : i32
    %c0_i32_0 = arith.constant 0 : i32
    return %arg0, %arg1, %arg2, %c0_i32 : i32, i32, i32, i32
  }
}

</mosaic_0001>

<llo_original>
// kernel: attend.1
$region0: #{attend.1}
  #allocation0 [shape = 'u32[]', space=smem, size = 0x4, offset = 0x4, fixed_abs, tag = 'smem constant byte address 0x4 - core index']
  #allocation1 [shape = 'u32[144,128]{1,0:T(1,128)}', space=vmem, size = 0x12000, scoped, tag = 'internal scratch']
  #allocation2 [shape = 'f32[16,1]{1,0:T(8,128)}', space=vmem, size = 0x2000, scoped, tag = 'scratch operand']
  #allocation3 [shape = 'f32[16,1]{1,0:T(8,128)}', space=vmem, size = 0x2000, scoped, tag = 'scratch operand']
  #allocation4 [shape = 'f32[16,64]{1,0:T(8,128)}', space=vmem, size = 0x2000, scoped, tag = 'scratch operand']
  %s0 = inlined_call_operand.hbm [shape: f32[2,4,16,64], index: 0, kind: input, shape index: {}]
  %s1 = inlined_call_operand.hbm [shape: f32[2,4,16,64], index: 1, kind: input, shape index: {}]
  %s2 = inlined_call_operand.hbm [shape: f32[2,4,16,64], index: 2, kind: input, shape index: {}]
  %s3 = inlined_call_operand.vmem [shape: f32[2,1,16], index: 3, kind: input, shape index: {}]
  %s4 = inlined_call_operand.hbm [shape: f32[2,4,16,64], index: 4, kind: output, shape index: {}]
  %s5 = sld [smem:[#allocation0]]
  $region73: #{attend.1} parent=0
    _
  %s7 = ssub.s32 1, %s5
  %s8 = scalar_select 0, %s7, %s5
  $region1: #{attend.1} parent=0
    #allocation5 [shape = 'u8[16384]{0}', space=vmem, size = 0x4000, scoped, tag = 'input window, operand 0']
    #allocation6 [shape = 's32[2]{0}', space=sflag, size = 0x8, scoped, tag = 'scoped memory for attend.1']
    #allocation7 [shape = 's32[2]{0}', space=sflag, size = 0x8, scoped, tag = 'scoped memory for attend.1']
    #allocation8 [shape = 'u8[16384]{0}', space=vmem, size = 0x4000, scoped, tag = 'input window, operand 1']
    #allocation9 [shape = 's32[2]{0}', space=sflag, size = 0x8, scoped, tag = 'scoped memory for attend.1']
    #allocation10 [shape = 'u8[16384]{0}', space=vmem, size = 0x4000, scoped, tag = 'input window, operand 2']
    #allocation11 [shape = 'u8[16384]{0}', space=vmem, size = 0x4000, scoped, tag = 'output window, operand 0']
    %9 = vsyncpa [#allocation6], 0
    %s10 = scalar_lea.sflag [#allocation6], 1
    %11 = vsyncpa %s10, 0
    %12 = vsyncpa [#allocation9], 0
    %s13 = scalar_lea.sflag [#allocation9], 1
    %14 = vsyncpa %s13, 0
    %15 = vsyncpa [#allocation7], 0
    %s16 = scalar_lea.sflag [#allocation7], 1
    %17 = vsyncpa %s16, 0
    loop: start=0, step=1, limit=10
    $region2: #{attend.1} parent=1 // loop_pre_header
      _
    $region3: #{attend.1} parent=1 // loop_header
      %s19 = sphi 0, %s23
      %p20 = scmp.ge.s32.totalorder %s19, 10
      %s26 = sphi 0, %s52
      %s27 = sphi 0, %s48
      %s28 = sphi 0, %s44
      %s29 = sphi 0, %s40
      %s30 = sphi 0, %s26
      %s31 = sphi 0, %s27
      %s32 = sphi 0, %s28
      %s33 = sphi 0, %s29
      %s34 = sphi 0, %s30
      %s35 = sphi 0, %s31
      %s36 = sphi 0, %s32
      %s37 = sphi 0, %s33
      %s59 = sphi 0, %s61
      %s62 = sphi 0, %s59
      %s63 = sphi 0, %s62
      %s79 = sphi 0, %s63
      %s89 = sphi 0, %s91
      %s92 = sphi 0, %s89
      %s93 = sphi 0, %s92
      %s109 = sphi 0, %s93
      %s119 = sphi 0, %s121
      %s122 = sphi 0, %s119
      %s123 = sphi 0, %s122
      %s139 = sphi 0, %s123
      %s147 = sphi 0, %s149
      %s150 = sphi 0, %s147
      %s151 = sphi 0, %s150
      %s167 = sphi 0, %s151
      %s177 = sphi 0, %s179
      %s180 = sphi 0, %s177
      %s181 = sphi 0, %s180
      %s197 = sphi 0, %s181
    $region4: #{attend.1} parent=1 // loop_header_branch
      %22 = sbr.rel (%p20) target = $region8
    $region5: #{attend.1} parent=1 // loop_body
      %s24 = ssub.s32 %s19, 1
      %s25 = ssub.s32 %s19, 2
      %s38 = sadd.s32 1, %s29
      %p39 = scmp.ge.s32.totalorder %s38, 1
      %s40 = scalar_select %p39, 0, %s38
      %s41 = sadd.s32 1, %s28
      %s42 = scalar_select %p39, %s41, %s28
      %p43 = scmp.ge.s32.totalorder %s42, 1
      %s44 = scalar_select %p43, 0, %s42
      %s45 = sadd.s32 1, %s27
      %s46 = scalar_select %p43, %s45, %s27
      %p47 = scmp.ge.s32.totalorder %s46, 4
      %s48 = scalar_select %p47, 0, %s46
      %s49 = sadd.s32 1, %s26
      %s50 = scalar_select %p47, %s49, %s26
      %p51 = scmp.ge.s32.totalorder %s50, 2
      %s52 = scalar_select %p51, 0, %s50
      %s53 = ssub.s32 %s26, %s52
      %s54 = ssub.s32 %s27, %s48
      %s55 = sor.u32 %s53, %s54
      %s56 = ssub.s32 %s28, %s44
      %s57 = sor.u32 %s55, %s56
      %p58 = scmp.eq.s32.totalorder %s57, 0
      %s60 = sadd.s32 %s59, 1
      %s61 = scalar_select %p58, %s59, %s60
      %p64 = pneg %p58
      %p65 = scmp.eq.s32.totalorder %s19, 7
      %p66 = por %p64, %p65
      %p67 = scmp.ne.s32.totalorder %s59, %s62
      %p68 = scmp.eq.s32.totalorder %s19, 0
      %p69 = por %p67, %p68
      %p70 = scmp.ne.s32.totalorder %s59, %s62
      %p71 = scmp.eq.s32.totalorder %s24, 7
      %p72 = por %p70, %p71
      %p73 = scmp.ne.s32.totalorder %s62, %s63
      %p74 = scmp.eq.s32.totalorder %s24, 0
      %p75 = por %p73, %p74
      %p76 = scmp.ne.s32.totalorder %s62, %s63
      %p77 = scmp.eq.s32.totalorder %s25, 7
      %p78 = por %p76, %p77
      %p80 = scmp.ne.s32.totalorder %s63, %s79
      %p81 = scmp.eq.s32.totalorder %s25, 0
      %p82 = por %p80, %p81
      %s83 = ssub.s32 %s26, %s52
      %s84 = ssub.s32 %s27, %s48
      %s85 = sor.u32 %s83, %s84
      %s86 = ssub.s32 %s29, %s40
      %s87 = sor.u32 %s85, %s86
      %p88 = scmp.eq.s32.totalorder %s87, 0
      %s90 = sadd.s32 %s89, 1
      %s91 = scalar_select %p88, %s89, %s90
      %p94 = pneg %p88
      %p95 = scmp.eq.s32.totalorder %s19, 7
      %p96 = por %p94, %p95
      %p97 = scmp.ne.s32.totalorder %s89, %s92
      %p98 = scmp.eq.s32.totalorder %s19, 0
      %p99 = por %p97, %p98
      %p100 = scmp.ne.s32.totalorder %s89, %s92
      %p101 = scmp.eq.s32.totalorder %s24, 7
      %p102 = por %p100, %p101
      %p103 = scmp.ne.s32.totalorder %s92, %s93
      %p104 = scmp.eq.s32.totalorder %s24, 0
      %p105 = por %p103, %p104
      %p106 = scmp.ne.s32.totalorder %s92, %s93
      %p107 = scmp.eq.s32.totalorder %s25, 7
      %p108 = por %p106, %p107
      %p110 = scmp.ne.s32.totalorder %s93, %s109
      %p111 = scmp.eq.s32.totalorder %s25, 0
      %p112 = por %p110, %p111
      %s113 = ssub.s32 %s26, %s52
      %s114 = ssub.s32 %s27, %s48
      %s115 = sor.u32 %s113, %s114
      %s116 = ssub.s32 %s29, %s40
      %s117 = sor.u32 %s115, %s116
      %p118 = scmp.eq.s32.totalorder %s117, 0
      %s120 = sadd.s32 %s119, 1
      %s121 = scalar_select %p118, %s119, %s120
      %p124 = pneg %p118
      %p125 = scmp.eq.s32.totalorder %s19, 7
      %p126 = por %p124, %p125
      %p127 = scmp.ne.s32.totalorder %s119, %s122
      %p128 = scmp.eq.s32.totalorder %s19, 0
      %p129 = por %p127, %p128
      %p130 = scmp.ne.s32.totalorder %s119, %s122
      %p131 = scmp.eq.s32.totalorder %s24, 7
      %p132 = por %p130, %p131
      %p133 = scmp.ne.s32.totalorder %s122, %s123
      %p134 = scmp.eq.s32.totalorder %s24, 0
      %p135 = por %p133, %p134
      %p136 = scmp.ne.s32.totalorder %s122, %s123
      %p137 = scmp.eq.s32.totalorder %s25, 7
      %p138 = por %p136, %p137
      %p140 = scmp.ne.s32.totalorder %s123, %s139
      %p141 = scmp.eq.s32.totalorder %s25, 0
      %p142 = por %p140, %p141
      %s143 = ssub.s32 %s26, %s52
      %s144 = ssub.s32 %s29, %s40
      %s145 = sor.u32 %s143, %s144
      %p146 = scmp.eq.s32.totalorder %s145, 0
      %s148 = sadd.s32 %s147, 1
      %s149 = scalar_select %p146, %s147, %s148
      %p152 = pneg %p146
      %p153 = scmp.eq.s32.totalorder %s19, 7
      %p154 = por %p152, %p153
      %p155 = scmp.ne.s32.totalorder %s147, %s150
      %p156 = scmp.eq.s32.totalorder %s19, 0
      %p157 = por %p155, %p156
      %p158 = scmp.ne.s32.totalorder %s147, %s150
      %p159 = scmp.eq.s32.totalorder %s24, 7
      %p160 = por %p158, %p159
      %p161 = scmp.ne.s32.totalorder %s150, %s151
      %p162 = scmp.eq.s32.totalorder %s24, 0
      %p163 = por %p161, %p162
      %p164 = scmp.ne.s32.totalorder %s150, %s151
      %p165 = scmp.eq.s32.totalorder %s25, 7
      %p166 = por %p164, %p165
      %p168 = scmp.ne.s32.totalorder %s151, %s167
      %p169 = scmp.eq.s32.totalorder %s25, 0
      %p170 = por %p168, %p169
      %s171 = ssub.s32 %s26, %s52
      %s172 = ssub.s32 %s27, %s48
      %s173 = sor.u32 %s171, %s172
      %s174 = ssub.s32 %s28, %s44
      %s175 = sor.u32 %s173, %s174
      %p176 = scmp.eq.s32.totalorder %s175, 0
      %s178 = sadd.s32 %s177, 1
      %s179 = scalar_select %p176, %s177, %s178
      %p182 = pneg %p176
      %p183 = scmp.eq.s32.totalorder %s19, 7
      %p184 = por %p182, %p183
      %p185 = scmp.ne.s32.totalorder %s177, %s180
      %p186 = scmp.eq.s32.totalorder %s19, 0
      %p187 = por %p185, %p186
      %p188 = scmp.ne.s32.totalorder %s177, %s180
      %p189 = scmp.eq.s32.totalorder %s24, 7
      %p190 = por %p188, %p189
      %p191 = scmp.ne.s32.totalorder %s180, %s181
      %p192 = scmp.eq.s32.totalorder %s24, 0
      %p193 = por %p191, %p192
      %p194 = scmp.ne.s32.totalorder %s180, %s181
      %p195 = scmp.eq.s32.totalorder %s25, 7
      %p196 = por %p194, %p195
      %p198 = scmp.ne.s32.totalorder %s181, %s197
      %p199 = scmp.eq.s32.totalorder %s25, 0
      %p200 = por %p198, %p199
      %p201 = scmp.le.s32.totalorder 1, %s19
      %p202 = scmp.lt.s32.totalorder %s19, 9
      %p203 = pnand %p201, %p202
      %p204 = pneg %p203
      // Predicated region
      $region9: #{attend.1} parent=5 // pred_check
        _
      $region10: #{attend.1} parent=5 // pred_check_branch
        %206 = sbr.rel (%p203) target = $region12
      $region11: #{attend.1} parent=5 // pred_region
        %s207 = ssub.s32 %s19, 1
      $region12: #{attend.1} parent=5 // pred_fallthru
        _
      %p208 = scmp.lt.s32.totalorder %s19, 8
      // Predicated region
      $region13: #{attend.1} parent=5 // pred_check
        %p209 = pneg %p208
      $region14: #{attend.1} parent=5 // pred_check_branch
        %211 = sbr.rel (%p209) target = $region16
      $region15: #{attend.1} parent=5 // pred_region
        // Predicated region
        $region17: #{attend.1} parent=15 // pred_check
          %p212 = pneg %p69
        $region18: #{attend.1} parent=15 // pred_check_branch
          %214 = sbr.rel (%p212) target = $region20
        $region19: #{attend.1} parent=15 // pred_region
          %s215 = sand.u32 %s59, 1
          %s216 = scalar_lea.sflag [#allocation6], %s215
          %s217 = sand.u32 %s59, 1
          %s218 = smul.addr %s217, 16
          %s219 = scalar_lea.vmem [#allocation5], %s218
          %s220 = smul.u32 2, %s28
          %s222 = ssub.s32 256, 256
          %223 = vsyncadd %s216, %s222
          %s224 = smul.addr %s27, 2
          %s225 = sadd.s32 %s220, %s224
          %s226 = smul.addr %s26, 8
          %s227 = sadd.s32 %s225, %s226
          %s228 = smul.addr %s227, 128
          %s229 = scalar_lea.hbm %s0, %s228
          %s230 = sshll.u32 %s219, 4
          %s231 = int_to_ptr.vmem [resolvable:$true] %s230
          %236 = dma.hbm_to_vmem [thread:$0]  %s229, 256, %s231, %s216, 128, 128, 8
        $region20: #{attend.1} parent=15 // pred_fallthru
          _
        // Predicated region
        $region21: #{attend.1} parent=15 // pred_check
          %p237 = pneg %p99
        $region22: #{attend.1} parent=15 // pred_check_branch
          %239 = sbr.rel (%p237) target = $region24
        $region23: #{attend.1} parent=15 // pred_region
          %s240 = sand.u32 %s19, 1
          %s241 = scalar_lea.sflag [#allocation9], %s240
          %s242 = sand.u32 %s89, 1
          %s243 = smul.addr %s242, 16
          %s244 = scalar_lea.vmem [#allocation8], %s243
          %s245 = smul.u32 2, %s29
          %s247 = ssub.s32 256, 256
          %248 = vsyncadd %s241, %s247
          %s249 = smul.addr %s27, 2
          %s250 = sadd.s32 %s245, %s249
          %s251 = smul.addr %s26, 8
          %s252 = sadd.s32 %s250, %s251
          %s253 = smul.addr %s252, 128
          %s254 = scalar_lea.hbm %s1, %s253
          %s255 = sshll.u32 %s244, 4
          %s256 = int_to_ptr.vmem [resolvable:$true] %s255
          %261 = dma.hbm_to_vmem [thread:$0]  %s254, 256, %s256, %s241, 128, 128, 8
        $region24: #{attend.1} parent=15 // pred_fallthru
          _
        // Predicated region
        $region25: #{attend.1} parent=15 // pred_check
          %p262 = pneg %p129
        $region26: #{attend.1} parent=15 // pred_check_branch
          %264 = sbr.rel (%p262) target = $region28
        $region27: #{attend.1} parent=15 // pred_region
          %s265 = sand.u32 %s19, 1
          %s266 = scalar_lea.sflag [#allocation9], %s265
          %s267 = sand.u32 %s119, 1
          %s268 = smul.addr %s267, 16
          %s269 = scalar_lea.vmem [#allocation10], %s268
          %s270 = smul.u32 2, %s29
          %s272 = ssub.s32 256, 256
          %273 = vsyncadd %s266, %s272
          %s274 = smul.addr %s27, 2
          %s275 = sadd.s32 %s270, %s274
          %s276 = smul.addr %s26, 8
          %s277 = sadd.s32 %s275, %s276
          %s278 = smul.addr %s277, 128
          %s279 = scalar_lea.hbm %s2, %s278
          %s280 = sshll.u32 %s269, 4
          %s281 = int_to_ptr.vmem [resolvable:$true] %s280
          %286 = dma.hbm_to_vmem [thread:$0]  %s279, 256, %s281, %s266, 128, 128, 8
        $region28: #{attend.1} parent=15 // pred_fallthru
          _
        // Predicated region
        $region29: #{attend.1} parent=15 // pred_check
          %p287 = pneg %p157
        $region30: #{attend.1} parent=15 // pred_check_branch
          %289 = sbr.rel (%p287) target = $region32
        $region31: #{attend.1} parent=15 // pred_region
          %p290 = scmp.lt.s32.totalorder %s26, 1
          %s291 = scalar_select %p290, %s26, 1
          %p292 = scmp.lt.s32.totalorder %s29, 0
          %s293 = scalar_select %p292, %s29, 0
          %s294 = sadd.s32 %s293, %s291
          %s295 = scalar_lea.vmem %s3, %s294
        $region32: #{attend.1} parent=15 // pred_fallthru
          _
      $region16: #{attend.1} parent=5 // pred_fallthru
        _
      %p296 = scmp.le.s32.totalorder 1, %s19
      %p297 = scmp.lt.s32.totalorder %s19, 9
      %p298 = pnand %p296, %p297
      %p299 = pneg %p298
      // Predicated region
      $region33: #{attend.1} parent=5 // pred_check
        _
      $region34: #{attend.1} parent=5 // pred_check_branch
        %301 = sbr.rel (%p298) target = $region36
      $region35: #{attend.1} parent=5 // pred_region
        %s302 = ssub.s32 %s19, 1
        %s303 = sand.u32 %s62, 1
        %s304 = scalar_lea.sflag [#allocation6], %s303
        %s305 = sand.u32 %s62, 1
        %s306 = smul.addr %s305, 16
        %s307 = scalar_lea.vmem [#allocation5], %s306
        // Predicated region
        $region37: #{attend.1} parent=35 // pred_check
          %p308 = pneg %p75
        $region38: #{attend.1} parent=35 // pred_check_branch
          %310 = sbr.rel (%p308) target = $region40
        $region39: #{attend.1} parent=35 // pred_region
          %311 = dma.done %s304, 256
        $region40: #{attend.1} parent=35 // pred_fallthru
          _
        %s312 = sand.u32 %s24, 1
        %s313 = scalar_lea.sflag [#allocation9], %s312
        %s314 = sand.u32 %s92, 1
        %s315 = smul.addr %s314, 16
        %s316 = scalar_lea.vmem [#allocation8], %s315
        // Predicated region
        $region41: #{attend.1} parent=35 // pred_check
          %p317 = pneg %p105
        $region42: #{attend.1} parent=35 // pred_check_branch
          %319 = sbr.rel (%p317) target = $region44
        $region43: #{attend.1} parent=35 // pred_region
          %320 = dma.done %s313, 256
        $region44: #{attend.1} parent=35 // pred_fallthru
          _
        %s321 = sand.u32 %s24, 1
        %s322 = scalar_lea.sflag [#allocation9], %s321
        %s323 = sand.u32 %s122, 1
        %s324 = smul.addr %s323, 16
        %s325 = scalar_lea.vmem [#allocation10], %s324
        // Predicated region
        $region45: #{attend.1} parent=35 // pred_check
          %p326 = pneg %p135
        $region46: #{attend.1} parent=35 // pred_check_branch
          %328 = sbr.rel (%p326) target = $region48
        $region47: #{attend.1} parent=35 // pred_region
          %329 = dma.done %s322, 256
        $region48: #{attend.1} parent=35 // pred_fallthru
          _
        %s330 = sand.u32 %s62, 1
        %s331 = scalar_lea.sflag [#allocation6], %s330
        %s332 = sand.u32 %s62, 1
        %s333 = smul.addr %s332, 16
        %s334 = scalar_lea.vmem [#allocation5], %s333
        %p335 = pneg %p75
        %p336 = pneg %p72
        %s337 = sand.u32 %s24, 1
        %s338 = scalar_lea.sflag [#allocation9], %s337
        %s339 = sand.u32 %s92, 1
        %s340 = smul.addr %s339, 16
        %s341 = scalar_lea.vmem [#allocation8], %s340
        %p342 = pneg %p105
        %p343 = pneg %p102
        %s344 = sand.u32 %s24, 1
        %s345 = scalar_lea.sflag [#allocation9], %s344
        %s346 = sand.u32 %s122, 1
        %s347 = smul.addr %s346, 16
        %s348 = scalar_lea.vmem [#allocation10], %s347
        %p349 = pneg %p135
        %p350 = pneg %p132
        %p351 = scmp.lt.s32.totalorder %s30, 1
        %s352 = scalar_select %p351, %s30, 1
        %p353 = scmp.lt.s32.totalorder %s33, 0
        %s354 = scalar_select %p353, %s33, 0
        %s355 = sadd.s32 %s354, %s352
        %s356 = scalar_lea.vmem %s3, %s355
        %p357 = pneg %p163
        %p358 = pneg %p160
        %p359 = pneg %p193
        %p360 = pneg %p190
        %s361 = sand.u32 %s180, 1
        %s362 = scalar_lea.sflag [#allocation7], %s361
        %s363 = sand.u32 %s180, 1
        %s364 = smul.addr %s363, 16
        %s365 = scalar_lea.vmem [#allocation11], %s364
        %s366 = smul.u32 2, %s32
        %s367 = smul.u32 2, %s33
        %s368 = smul.u32 2, %s33
        %p369 = scmp.lt.s32.totalorder %s30, 1
        %s370 = scalar_select %p369, %s30, 1
        %p371 = scmp.lt.s32.totalorder %s33, 0
        %s372 = scalar_select %p371, %s33, 0
        %s373 = sadd.s32 %s372, %s370
        %s374 = scalar_lea.vmem %s3, %s373
        %s375 = smul.u32 2, %s32
        %p376 = scmp.eq.s32.totalorder %s33, 0
        // Predicated region
        $region49: #{attend.1} parent=35 // pred_check
          %p377 = pneg %p376
        $region50: #{attend.1} parent=35 // pred_check_branch
          %379 = sbr.rel (%p377) target = $region52
        $region51: #{attend.1} parent=35 // pred_region
          %vm380 = vcmask 7168
          %381 = vst.msk [vmem:[#allocation2] sm:$0xff] %vm380, -3.4028235e+38
          %382 = vst.msk [vmem:[#allocation2 + $0x8] sm:$0xff] %vm380, -3.4028235e+38
          %383 = vst.msk [vmem:[#allocation3] sm:$0xff] %vm380, 0.0
          %384 = vst.msk [vmem:[#allocation3 + $0x8] sm:$0xff] %vm380, 0.0
          %vm385 = vcmask 523264
          %386 = vst.msk [vmem:[#allocation4] sm:$0xff] %vm385, 0.0
          %387 = vst.msk [vmem:[#allocation4 + $0x8] sm:$0xff] %vm385, 0.0
        $region52: #{attend.1} parent=35 // pred_fallthru
          _
        %s388 = smul.u32 %s33, 16
        %s389 = sadd.s32 %s32, 1
        %s390 = smul.u32 %s389, 16
        %p391 = scmp.lt.s32.totalorder %s388, %s390
        // Predicated region
        $region53: #{attend.1} parent=35 // pred_check
          %p392 = pneg %p391
        $region54: #{attend.1} parent=35 // pred_check_branch
          %394 = sbr.rel (%p392) target = $region56
        $region55: #{attend.1} parent=35 // pred_region
          %v395 = vld [vmem:[%s307] sm:$0xff]
          %v396 = vld [vmem:[%s307 + $0x8] sm:$0xff]
          %v397 = vmul.f32 %v395, 0.125
          %v398 = vmul.f32 %v396, 0.125
          %v399 = vld [vmem:[%s316] sm:$0xff]
          %v400 = vld [vmem:[%s316 + $0x8] sm:$0xff]
          %vm401 = vcmask 523264
          %v403 = vsel %vm401, %v397, 0
          %v406 = vsel %vm401, %v398, 0
          %v409 = vsel %vm401, %v399, 0
          %v412 = vsel %vm401, %v400, 0
          %414 = vmatprep.subr.mxu0 0.0
          %415 = vmatpush1.xpose.msra.mxu0 %v409
          %416 = vmatprep.subr.mxu0 0.0
          %417 = vmatpush1.xpose.msra.mxu0 %v412
          %418 = vmatprep.subr.mxu0 0.0
          %419 = vmatpush1.xpose.msra.mxu0 0.0
          %420 = vmatprep.subr.mxu0 0.0
          %421 = vmatpush1.xpose.msra.mxu0 0.0
          %422 = vmatprep.subr.mxu0 0.0
          %423 = vmatpush1.xpose.msra.mxu0 0.0
          %424 = vmatprep.subr.mxu0 0.0
          %425 = vmatpush1.xpose.msra.mxu0 0.0
          %426 = vmatprep.subr.mxu0 0.0
          %427 = vmatpush1.xpose.msra.mxu0 0.0
          %428 = vmatprep.subr.mxu0 0.0
          %429 = vmatpush1.xpose.msra.mxu0 0.0
          %430 = vmatprep.subr.mxu0 0.0
          %431 = vmatpush1.xpose.msra.mxu0 0.0
          %432 = vmatprep.subr.mxu0 0.0
          %433 = vmatpush1.xpose.msra.mxu0 0.0
          %434 = vmatprep.subr.mxu0 0.0
          %435 = vmatpush1.xpose.msra.mxu0 0.0
          %436 = vmatprep.subr.mxu0 0.0
          %437 = vmatpush1.xpose.msra.mxu0 0.0
          %438 = vmatprep.subr.mxu0 0.0
          %439 = vmatpush1.xpose.msra.mxu0 0.0
          %440 = vmatprep.subr.mxu0 0.0
          %441 = vmatpush1.xpose.msra.mxu0 0.0
          %442 = vmatprep.subr.mxu0 0.0
          %443 = vmatpush1.xpose.msra.mxu0 0.0
          %444 = vmatprep.subr.mxu0 0.0
          %445 = vmatpush1.xpose.msra.mxu0 0.0
          %446 = vmatprep.subr.mxu0 0.0
          %447 = vmatpush1.xpose.msra.mxu0 0.0
          %448 = vmatprep.subr.mxu0 0.0
          %449 = vmatpush1.xpose.msra.mxu0 0.0
          %450 = vmatprep.subr.mxu0 0.0
          %451 = vmatpush1.xpose.msra.mxu0 0.0
          %452 = vmatprep.subr.mxu0 0.0
          %453 = vmatpush1.xpose.msra.mxu0 0.0
          %454 = vmatprep.subr.mxu0 0.0
          %455 = vmatpush1.xpose.msra.mxu0 0.0
          %456 = vmatprep.subr.mxu0 0.0
          %457 = vmatpush1.xpose.msra.mxu0 0.0
          %458 = vmatprep.subr.mxu0 0.0
          %459 = vmatpush1.xpose.msra.mxu0 0.0
          %460 = vmatprep.subr.mxu0 0.0
          %461 = vmatpush1.xpose.msra.mxu0 0.0
          %462 = vmatprep.subr.mxu0 0.0
          %463 = vmatpush1.xpose.msra.mxu0 0.0
          %464 = vmatprep.subr.mxu0 0.0
          %465 = vmatpush1.xpose.msra.mxu0 0.0
          %466 = vmatprep.subr.mxu0 0.0
          %467 = vmatpush1.xpose.msra.mxu0 0.0
          %468 = vmatprep.subr.mxu0 0.0
          %469 = vmatpush1.xpose.msra.mxu0 0.0
          %470 = vmatprep.subr.mxu0 0.0
          %471 = vmatpush1.xpose.msra.mxu0 0.0
          %472 = vmatprep.subr.mxu0 0.0
          %473 = vmatpush1.xpose.msra.mxu0 0.0
          %474 = vmatprep.subr.mxu0 0.0
          %475 = vmatpush1.xpose.msra.mxu0 0.0
          %476 = vmatprep.subr.mxu0 0.0
          %477 = vmatpush1.xpose.msra.mxu0 0.0
          %478 = vmatprep.mubr.f32.mxu0 0.0
          %479 = vmatmul.mubr.f32.gmra.mrb[0].mxu0 %v403
          %v480 = vpop.f32.mrb[0].mxu0
          %v481 = vadd.f32 0.0, %v480
          %v482 = vpop.f32.mrb[0].mxu0
          %483 = vmatprep.mubr.f32.mxu0 0.0
          %484 = vmatmul.mubr.f32.gmra.mrb[0].mxu0 %v406
          %v485 = vpop.f32.mrb[0].mxu0
          %v486 = vadd.f32 0.0, %v485
          %v487 = vpop.f32.mrb[0].mxu0
          %488 = vdwg.mxu0
          %v489 = vld [vmem:[%s374] sm:$0x1]
          %vm490 = vcmp.gt.f32.partialorder %v489, 0.0
          %v491 = vsel %vm490, 1, 0
          %v492 = vlaneseq
          %v493 = vshrl.u32 %v492, 7
          %v494 = vsub.s32 0, %v493
          %v495 = vrot.slane %v491, %v494
          %vm496 = vcmp.eq.s32.totalorder %v495, 1
          %v497 = vsel %vm496, %v481, -3.4028235e+38
          %v498 = vsel %vm496, %v486, -3.4028235e+38
          %s499 = smul.u32 %s32, 16
          %v500 = vlaneseq
          %v501 = vshrl.u32 %v500, 7
          %v502 = vadd.s32 %v501, 8
          %v503 = vstv %s499
          %v504 = vadd.s32 %v503, %v501
          %v505 = vadd.s32 %v503, %v502
          %v506 = vlaneseq
          %v507 = vand.u32 %v506, 127
          %v508 = vstv %s388
          %v509 = vadd.s32 %v508, %v507
          %vm510 = vcmp.gt.s32.totalorder %v509, %v504
          %vm511 = vcmp.gt.s32.totalorder %v509, %v505
          %v512 = vsel %vm510, -3.4028235e+38, %v497
          %v513 = vsel %vm511, -3.4028235e+38, %v498
          %v514 = vld [vmem:[#allocation2] sm:$0xff]
          %v515 = vld [vmem:[#allocation2 + $0x8] sm:$0xff]
          %vm516 = vcmask 130048
          %v517 = vsel %vm516, %v512, -inf
          %518 = vmax.xlane.f32.xlu0 %v517
          %v519 = vpop.xlane.xlu0 %518
          %v520 = vsel %vm516, %v513, -inf
          %521 = vmax.xlane.f32.xlu0 %v520
          %v522 = vpop.xlane.xlu0 %521
          %v523 = vmax.f32 %v514, %v519
          %v524 = vmax.f32 %v515, %v522
          %v525 = vsub.f32 %v514, %v523
          %v526 = vsub.f32 %v515, %v524
          %v527 = vmul.f32 %v525, 1.442695
          %v528 = vpow.pop %v527
          %v529 = vmul.f32 %v526, 1.442695
          %v530 = vpow.pop %v529
          %532 = vset.pattern.permute.xlu0 0
          %533 = vperm.xlu0 %532, %v523
          %v534 = vpop.permute.xlu0 %533
          %537 = vset.pattern.permute.xlu0 0
          %538 = vperm.xlu0 %537, %v524
          %v539 = vpop.permute.xlu0 %538
          %v541 = vsub.f32 %v512, %v534
          %v542 = vsub.f32 %v513, %v539
          %v543 = vmul.f32 %v541, 1.442695
          %v544 = vpow.pop %v543
          %v545 = vmul.f32 %v542, 1.442695
          %v546 = vpow.pop %v545
          %v547 = vld [vmem:[#allocation3] sm:$0xff]
          %v548 = vld [vmem:[#allocation3 + $0x8] sm:$0xff]
          %v549 = vmul.f32 %v528, %v547
          %v550 = vmul.f32 %v530, %v548
          %v551 = vsel %vm516, %v544, 0.0
          %552 = vadd.xlane.f32.xlu0 %v551
          %v553 = vpop.xlane.xlu0 %552
          %v554 = vsel %vm516, %v546, 0.0
          %555 = vadd.xlane.f32.xlu0 %v554
          %v556 = vpop.xlane.xlu0 %555
          %v557 = vadd.f32 %v549, %v553
          %v558 = vadd.f32 %v550, %v556
          %vm559 = vcmask 7168
          %560 = vst.msk [vmem:[#allocation3] sm:$0xff] %vm559, %v557
          %561 = vst.msk [vmem:[#allocation3 + $0x8] sm:$0xff] %vm559, %v558
          %v562 = vld [vmem:[#allocation4] sm:$0xff]
          %v563 = vld [vmem:[#allocation4 + $0x8] sm:$0xff]
          %565 = vset.pattern.permute.xlu0 0
          %566 = vperm.xlu0 %565, %v528
          %v567 = vpop.permute.xlu0 %566
          %570 = vset.pattern.permute.xlu0 0
          %571 = vperm.xlu0 %570, %v530
          %v572 = vpop.permute.xlu0 %571
          %v574 = vmul.f32 %v567, %v562
          %v575 = vmul.f32 %v572, %v563
          %v576 = vld [vmem:[%s325] sm:$0xff]
          %v577 = vld [vmem:[%s325 + $0x8] sm:$0xff]
          %v579 = vsel %vm516, %v544, 0
          %v582 = vsel %vm516, %v546, 0
          %584 = vmatprep.subr.mxu0 0.0
          %585 = vmatpush1.msra.mxu0 %v576
          %586 = vmatprep.subr.mxu0 0.0
          %587 = vmatpush1.msra.mxu0 %v577
          %588 = vmatprep.subr.mxu0 0.0
          %589 = vmatpush1.msra.mxu0 0.0
          %590 = vmatprep.subr.mxu0 0.0
          %591 = vmatpush1.msra.mxu0 0.0
          %592 = vmatprep.subr.mxu0 0.0
          %593 = vmatpush1.msra.mxu0 0.0
          %594 = vmatprep.subr.mxu0 0.0
          %595 = vmatpush1.msra.mxu0 0.0
          %596 = vmatprep.subr.mxu0 0.0
          %597 = vmatpush1.msra.mxu0 0.0
          %598 = vmatprep.subr.mxu0 0.0
          %599 = vmatpush1.msra.mxu0 0.0
          %600 = vmatprep.subr.mxu0 0.0
          %601 = vmatpush1.msra.mxu0 0.0
          %602 = vmatprep.subr.mxu0 0.0
          %603 = vmatpush1.msra.mxu0 0.0
          %604 = vmatprep.subr.mxu0 0.0
          %605 = vmatpush1.msra.mxu0 0.0
          %606 = vmatprep.subr.mxu0 0.0
          %607 = vmatpush1.msra.mxu0 0.0
          %608 = vmatprep.subr.mxu0 0.0
          %609 = vmatpush1.msra.mxu0 0.0
          %610 = vmatprep.subr.mxu0 0.0
          %611 = vmatpush1.msra.mxu0 0.0
          %612 = vmatprep.subr.mxu0 0.0
          %613 = vmatpush1.msra.mxu0 0.0
          %614 = vmatprep.subr.mxu0 0.0
          %615 = vmatpush1.msra.mxu0 0.0
          %616 = vmatprep.subr.mxu0 0.0
          %617 = vmatpush1.msra.mxu0 0.0
          %618 = vmatprep.subr.mxu0 0.0
          %619 = vmatpush1.msra.mxu0 0.0
          %620 = vmatprep.subr.mxu0 0.0
          %621 = vmatpush1.msra.mxu0 0.0
          %622 = vmatprep.subr.mxu0 0.0
          %623 = vmatpush1.msra.mxu0 0.0
          %624 = vmatprep.subr.mxu0 0.0
          %625 = vmatpush1.msra.mxu0 0.0
          %626 = vmatprep.subr.mxu0 0.0
          %627 = vmatpush1.msra.mxu0 0.0
          %628 = vmatprep.subr.mxu0 0.0
          %629 = vmatpush1.msra.mxu0 0.0
          %630 = vmatprep.subr.mxu0 0.0
          %631 = vmatpush1.msra.mxu0 0.0
          %632 = vmatprep.subr.mxu0 0.0
          %633 = vmatpush1.msra.mxu0 0.0
          %634 = vmatprep.subr.mxu0 0.0
          %635 = vmatpush1.msra.mxu0 0.0
          %636 = vmatprep.subr.mxu0 0.0
          %637 = vmatpush1.msra.mxu0 0.0
          %638 = vmatprep.subr.mxu0 0.0
          %639 = vmatpush1.msra.mxu0 0.0
          %640 = vmatprep.subr.mxu0 0.0
          %641 = vmatpush1.msra.mxu0 0.0
          %642 = vmatprep.subr.mxu0 0.0
          %643 = vmatpush1.msra.mxu0 0.0
          %644 = vmatprep.subr.mxu0 0.0
          %645 = vmatpush1.msra.mxu0 0.0
          %646 = vmatprep.subr.mxu0 0.0
          %647 = vmatpush1.msra.mxu0 0.0
          %648 = vmatprep.mubr.f32.mxu0 0.0
          %649 = vmatmul.mubr.f32.gmra.mrb[0].mxu0 %v579
          %v650 = vpop.f32.mrb[0].mxu0
          %v651 = vadd.f32 0.0, %v650
          %v652 = vpop.f32.mrb[0].mxu0
          %653 = vmatprep.mubr.f32.mxu0 0.0
          %654 = vmatmul.mubr.f32.gmra.mrb[0].mxu0 %v582
          %v655 = vpop.f32.mrb[0].mxu0
          %v656 = vadd.f32 0.0, %v655
          %v657 = vpop.f32.mrb[0].mxu0
          %658 = vdwg.mxu0
          %v659 = vadd.f32 %v574, %v651
          %v660 = vadd.f32 %v575, %v656
          %661 = vst.msk [vmem:[#allocation4] sm:$0xff] %vm401, %v659
          %662 = vst.msk [vmem:[#allocation4 + $0x8] sm:$0xff] %vm401, %v660
          %663 = vst.msk [vmem:[#allocation2] sm:$0xff] %vm559, %v523
          %664 = vst.msk [vmem:[#allocation2 + $0x8] sm:$0xff] %vm559, %v524
        $region56: #{attend.1} parent=35 // pred_fallthru
          _
        // Predicated region
        $region57: #{attend.1} parent=35 // pred_check
          %p665 = pneg %p376
        $region58: #{attend.1} parent=35 // pred_check_branch
          %667 = sbr.rel (%p665) target = $region60
        $region59: #{attend.1} parent=35 // pred_region
          %v668 = vld [vmem:[#allocation3] sm:$0xff]
          %v669 = vld [vmem:[#allocation3 + $0x8] sm:$0xff]
          %v670 = vrcp.pop %v668
          %v671 = vrcp.pop %v669
          %v672 = vld [vmem:[#allocation4] sm:$0xff]
          %v673 = vld [vmem:[#allocation4 + $0x8] sm:$0xff]
          %675 = vset.pattern.permute.xlu0 0
          %676 = vperm.xlu0 %675, %v670
          %v677 = vpop.permute.xlu0 %676
          %680 = vset.pattern.permute.xlu0 0
          %681 = vperm.xlu0 %680, %v671
          %v682 = vpop.permute.xlu0 %681
          %v684 = vmul.f32 %v672, %v677
          %v685 = vmul.f32 %v673, %v682
          %vm686 = vcmask 523264
          %687 = vst.msk [vmem:[%s365] sm:$0xff] %vm686, %v684
          %688 = vst.msk [vmem:[%s365 + $0x8] sm:$0xff] %vm686, %v685
        $region60: #{attend.1} parent=35 // pred_fallthru
          _
        %s689 = sand.u32 %s180, 1
        %s690 = scalar_lea.sflag [#allocation7], %s689
        %s691 = sand.u32 %s180, 1
        %s692 = smul.addr %s691, 16
        %s693 = scalar_lea.vmem [#allocation11], %s692
        // Predicated region
        $region61: #{attend.1} parent=35 // pred_check
          %p694 = pneg %p190
        $region62: #{attend.1} parent=35 // pred_check_branch
          %696 = sbr.rel (%p694) target = $region64
        $region63: #{attend.1} parent=35 // pred_region
          %s697 = smul.u32 2, %s32
          %s699 = ssub.s32 256, 256
          %700 = vsyncadd %s690, %s699
          %s701 = smul.addr %s31, 2
          %s702 = sadd.s32 %s697, %s701
          %s703 = smul.addr %s30, 8
          %s704 = sadd.s32 %s702, %s703
          %s705 = smul.addr %s704, 128
          %s706 = scalar_lea.hbm %s4, %s705
          %s707 = sshll.u32 %s693, 4
          %s708 = int_to_ptr.vmem [resolvable:$true] %s707
          %713 = dma.vmem_to_hbm [thread:$0]  %s708, 256, %s706, %s690, 128, 128, 8
        $region64: #{attend.1} parent=35 // pred_fallthru
          _
      $region36: #{attend.1} parent=5 // pred_fallthru
        _
      %p714 = scmp.le.s32.totalorder 2, %s19
      // Predicated region
      $region65: #{attend.1} parent=5 // pred_check
        %p715 = pneg %p714
      $region66: #{attend.1} parent=5 // pred_check_branch
        %717 = sbr.rel (%p715) target = $region68
      $region67: #{attend.1} parent=5 // pred_region
        %s718 = ssub.s32 %s19, 2
        // Predicated region
        $region69: #{attend.1} parent=67 // pred_check
          %p719 = pneg %p196
        $region70: #{attend.1} parent=67 // pred_check_branch
          %721 = sbr.rel (%p719) target = $region72
        $region71: #{attend.1} parent=67 // pred_region
          %s722 = sand.u32 %s181, 1
          %s723 = scalar_lea.sflag [#allocation7], %s722
          %s724 = sand.u32 %s181, 1
          %s725 = smul.addr %s724, 16
          %s726 = scalar_lea.vmem [#allocation11], %s725
          %727 = dma.done %s723, 256
        $region72: #{attend.1} parent=67 // pred_fallthru
          _
      $region68: #{attend.1} parent=5 // pred_fallthru
        _
    $region6: #{attend.1} parent=1 // loop_footer
      %s23 = sadd.s32 1, %s19
    $region7: #{attend.1} parent=1 // loop_footer_branch
      %18 = sbr.rel target = $region3
    $region8: #{attend.1} parent=1 // loop_exit
      _
    %728 = vsyncpa [#allocation6], 1
    %s729 = scalar_lea.sflag [#allocation6], 1
    %730 = vsyncpa %s729, 1
    %731 = vsyncpa [#allocation9], 1
    %s732 = scalar_lea.sflag [#allocation9], 1
    %733 = vsyncpa %s732, 1
    %734 = vsyncpa [#allocation7], 1
    %s735 = scalar_lea.sflag [#allocation7], 1
    %736 = vsyncpa %s735, 1

</llo_original>
